<compile_context>
chip_gen: v6e
topology: v6e:2x2x1
jax: 0.10.0
libtpu: 0.0.40
codegen_flags: <defaults>
</compile_context>

<pallas_src>
import math

import jax
import jax.numpy as jnp
from jax.experimental import pallas as pl
from jax.experimental.pallas import tpu as pltpu

LANE = 128
ROW_ALIGN = 16            # bf16 packs 16 rows per sublane-packed vreg slab
STATS_ROWS = 8            # stats slab sublane height -> (8, 128)-aligned blocks


def _round_up(x, m):
    return (x + m - 1) // m * m


def _vmem_capacity_bytes():
    try:
        info = pltpu.get_tpu_info()
        cap = getattr(info, "vmem_capacity_bytes", None)
        if cap:
            return int(cap)
    except Exception:
        pass
    return 64 * 1024 * 1024   # conservative default: v7x per-TensorCore VMEM


def _block_spec(shape, index_map, *, single_buffer=False):
    """BlockSpec; constant-index blocks get a single buffer (no dead double buffer)."""
    if single_buffer:
        try:
            return pl.BlockSpec(shape, index_map, pipeline_mode=pl.Buffered(1))
        except Exception:
            pass   # older JAX without pipeline_mode -> fall back to default
    return pl.BlockSpec(shape, index_map)


# ---------------------------------------------------------------------------
# Pass 1: conv matmul (bf16 x bf16 -> f32 accumulate) + in-kernel pool-member
#         max/min reduction + per-channel sum / sum-of-squares accumulation.
# ---------------------------------------------------------------------------
def conv_stats_kernel(patches_ref, w_ref, mx_ref, mn_ref, sum_ref, sumsq_ref):
    @pl.when(pl.program_id(1) == 0)       # inner ("arbitrary") axis step 0, per split
    def _init():
        sum_ref[...] = jnp.zeros_like(sum_ref)
        sumsq_ref[...] = jnp.zeros_like(sumsq_ref)

    n_members = patches_ref.shape[0]
    w = w_ref[...]

    mx = mn = tile_sum = tile_sumsq = None
    # Static (unrolled) loop over pool-window members (4 for a 2x2 pool): one
    # (row_tile, Kp) @ (Kp, Cp) MXU matmul each.  max/min/sum/sumsq are consumed as
    # they are produced, so no (n_members*row_tile, Cp) f32 temporary is ever built.
    for m in range(n_members):
        conv_m = jnp.dot(patches_ref[m], w, preferred_element_type=jnp.float32)
        if m == 0:
            mx = conv_m
            mn = conv_m
            tile_sum = jnp.sum(conv_m, axis=0, keepdims=True)
            tile_sumsq = jnp.sum(conv_m * conv_m, axis=0, keepdims=True)
        else:
            mx = jnp.maximum(mx, conv_m)
            mn = jnp.minimum(mn, conv_m)
            tile_sum = tile_sum + jnp.sum(conv_m, axis=0, keepdims=True)
            tile_sumsq = tile_sumsq + jnp.sum(conv_m * conv_m, axis=0, keepdims=True)

    mx_ref[...] = mx
    mn_ref[...] = mn
    # (1, Cp) broadcasts over the 8-row stats slab (keeps blocks (8,128)-aligned).
    sum_ref[...] += tile_sum
    sumsq_ref[...] += tile_sumsq


# ---------------------------------------------------------------------------
# Pass 2: folded BN affine + max-pool + ReLU as a single elementwise pass.
# ---------------------------------------------------------------------------
def bn_pool_relu_kernel(mx_ref, mn_ref, scale_ref, shift_ref, out_ref):
    scale = scale_ref[...]          # (1, Cp)
    shift = shift_ref[...]
    # The per-channel BN affine is monotone: pool(scale*x + shift) uses max(x) when
    # scale >= 0 and min(x) otherwise -- exact without the full conv activation map.
    pooled = jnp.where(scale >= 0.0, mx_ref[...], mn_ref[...]) * scale + shift
    out_ref[...] = jnp.maximum(pooled, 0.0).astype(out_ref.dtype)


def conv_block_forward(x_nchw, conv_w, conv_b, bn_gamma, bn_beta,
                       *, conv_stride, conv_padding,
                       pool_kernel, pool_stride, pool_padding,
                       eps=1e-5, row_tile=None):
    # TODO(synk): MaxPool2d padding (-inf spatial pad) not implemented; require 0.
    assert pool_padding == 0
    N, Cin, H, W = x_nchw.shape
    Cout, Cin_w, KH, KW = conv_w.shape
    assert Cin_w == Cin

    OH = (H + 2 * conv_padding - KH) // conv_stride + 1
    OW = (W + 2 * conv_padding - KW) // conv_stride + 1
    PH = (OH - pool_kernel) // pool_stride + 1
    PW = (OW - pool_kernel) // pool_stride + 1
    # BN statistics are accumulated over the pool-window members; this must be a
    # bijection onto the conv output positions for the statistics to be exact.
    assert pool_kernel == pool_stride and OH % pool_stride == 0 and OW % pool_stride == 0

    n_members = pool_kernel * pool_kernel
    n_windows = N * PH * PW
    K = KH * KW * Cin

    # Lane-dense padding for the contraction (K) and output-channel (Cout) axes.
    # 128 is also the native MXU N width on v5e, so Cp blocks stay lean there.
    Kp = _round_up(K, LANE)
    Cp = _round_up(Cout, LANE)

    # ---- VMEM-aware tiling -------------------------------------------------
    vmem_cap = _vmem_capacity_bytes()
    # Scoped-VMEM limit: generous on 128 MiB parts (v5e/v6e), conservative on v7x.
    vmem_limit = int(min(vmem_cap * 3 // 4, 100 * 1024 * 1024))
    if row_tile is None:
        # Per-grid-step VMEM footprint, per im2col row of the tile:
        #   bf16 patches tile (double-buffered)            2 * nm * Kp * 2
        #   f32 max/min output tiles (double-buffered)     2 * 2 * Cp * 4
        #   f32 in-kernel temporaries (conv_m, mx, mn)    ~4 * Cp * 4
        per_row = 2 * n_members * Kp * 2 + 2 * 2 * Cp * 4 + 4 * Cp * 4
        fixed = Kp * Cp * 2                          # single-buffered weight tile
        budget = max(int(vmem_cap * 0.35) - fixed, 1 << 20)
        row_tile = budget // per_row
    row_tile = max(ROW_ALIGN, min(row_tile, 1024, _round_up(n_windows, ROW_ALIGN)))
    row_tile = _round_up(row_tile, ROW_ALIGN)

    # Outer "parallel" split so pass 1 can use both TensorCores on v7x (harmless on
    # single-TC v5e/v6e); skipped when there is only one tile's worth of rows.
    n_splits = 2 if _round_up(n_windows, row_tile) // row_tile >= 2 else 1
    n_windows_p = _round_up(n_windows, row_tile * n_splits)
    tiles_per_split = n_windows_p // (row_tile * n_splits)
    n_tiles = n_splits * tiles_per_split

    # ---- XLA glue: im2col (NHWC), member-major pool layout, pad, bf16 cast ----
    # TODO(synk): im2col is still materialized by XLA (KH*KW x the activation bytes
    # in HBM); moving the (kh, kw) gather into pass 1 via shifted-window BlockSpecs
    # or manual DMA would cut pass-1 input traffic ~KH*KW-fold.
    x = jnp.transpose(x_nchw, (0, 2, 3, 1)).astype(jnp.float32)            # NHWC
    xp = jnp.pad(x, ((0, 0), (conv_padding,) * 2, (conv_padding,) * 2, (0, 0)))
    cols = []
    for i in range(KH):
        for j in range(KW):
            cols.append(xp[:, i:i + OH * conv_stride:conv_stride,
                            j:j + OW * conv_stride:conv_stride, :])
    patches = jnp.stack(cols, axis=3).reshape(N, OH, OW, K)   # (kh, kw, cin) columns

    members = []
    for pi in range(pool_kernel):
        for pj in range(pool_kernel):
            blk = patches[:, pi:pi + PH * pool_stride:pool_stride,
                             pj:pj + PW * pool_stride:pool_stride, :]
            members.append(blk.reshape(n_windows, K))
    mat = jnp.stack(members, axis=0)                       # [n_members, n_windows, K]
    mat = jnp.pad(mat, ((0, 0), (0, n_windows_p - n_windows), (0, Kp - K)))
    mat = mat.astype(jnp.bfloat16)

    # Weight -> [Kp, Cp] in matching (kh, kw, cin) row order.  Conv bias dropped:
    # a per-channel constant before training-mode BN is cancelled by the mean.
    del conv_b
    w_mat = jnp.transpose(conv_w, (2, 3, 1, 0)).reshape(K, Cout)
    w_mat = jnp.pad(w_mat, ((0, Kp - K), (0, Cp - Cout))).astype(jnp.bfloat16)

    # ---- pass 1: conv + per-window max/min + BN statistics ----
    m_rows = n_members * n_windows_p
    cost1 = pl.CostEstimate(
        flops=2 * m_rows * Kp * Cp,
        transcendentals=0,
        bytes_accessed=(mat.size * 2 + w_mat.size * 2
                        + 2 * n_windows_p * Cp * 4
                        + 2 * n_splits * STATS_ROWS * Cp * 4))
    mx2d, mn2d, csum, csumsq = pl.pallas_call(
        conv_stats_kernel,
        out_shape=(
            jax.ShapeDtypeStruct((n_windows_p, Cp), jnp.float32),            # max
            jax.ShapeDtypeStruct((n_windows_p, Cp), jnp.float32),            # min
            jax.ShapeDtypeStruct((n_splits * STATS_ROWS, Cp), jnp.float32),  # sum
            jax.ShapeDtypeStruct((n_splits * STATS_ROWS, Cp), jnp.float32),  # sumsq
        ),
        grid=(n_splits, tiles_per_split),
        in_specs=[
            _block_spec((n_members, row_tile, Kp),
                        lambda c, i: (0, c * tiles_per_split + i, 0)),
            _block_spec((Kp, Cp), lambda c, i: (0, 0), single_buffer=True),
        ],
        out_specs=(
            _block_spec((row_tile, Cp), lambda c, i: (c * tiles_per_split + i, 0)),
            _block_spec((row_tile, Cp), lambda c, i: (c * tiles_per_split + i, 0)),
            _block_spec((STATS_ROWS, Cp), lambda c, i: (c, 0)),
            _block_spec((STATS_ROWS, Cp), lambda c, i: (c, 0)),
        ),
        compiler_params=pltpu.CompilerParams(
            # outer split feeds both TCs on v7x; inner axis accumulates the stats
            dimension_semantics=("parallel", "arbitrary"),
            vmem_limit_bytes=vmem_limit),
        cost_estimate=cost1,
    )(mat, w_mat)

    # ---- tiny XLA glue: fold BN into per-channel scale / shift vectors ----
    # TODO(synk): running_mean / running_var buffer updates are not modeled.
    count = float(n_members * n_windows)           # true number of conv positions
    sum_rows = csum.reshape(n_splits, STATS_ROWS, Cp)[:, 0, :]     # (n_splits, Cp)
    sq_rows = csumsq.reshape(n_splits, STATS_ROWS, Cp)[:, 0, :]
    mean = jnp.sum(sum_rows, axis=0, keepdims=True) / count        # (1, Cp)
    ex2 = jnp.sum(sq_rows, axis=0, keepdims=True) / count
    # TODO(synk): single-pass E[x^2]-E[x]^2 can cancel if |mean| >> std; switch to a
    # shifted / two-pass formulation if tolerances ever tighten.
    var = jnp.maximum(ex2 - mean * mean, 0.0)                      # biased variance
    gamma_row = jnp.pad(bn_gamma.astype(jnp.float32), (0, Cp - Cout)).reshape(1, Cp)
    beta_row = jnp.pad(bn_beta.astype(jnp.float32), (0, Cp - Cout)).reshape(1, Cp)
    scale = gamma_row * jax.lax.rsqrt(var + eps)
    shift = beta_row - mean * scale

    # ---- pass 2: BN apply + pool (max/min select) + ReLU ----
    cost2 = pl.CostEstimate(
        flops=4 * n_windows_p * Cp,
        transcendentals=0,
        bytes_accessed=3 * n_windows_p * Cp * 4 + 2 * Cp * 4)
    out2d = pl.pallas_call(
        bn_pool_relu_kernel,
        out_shape=jax.ShapeDtypeStruct((n_windows_p, Cp), jnp.float32),
        grid=(n_tiles,),
        in_specs=[
            _block_spec((row_tile, Cp), lambda i: (i, 0)),
            _block_spec((row_tile, Cp), lambda i: (i, 0)),
            _block_spec((1, Cp), lambda i: (0, 0), single_buffer=True),
            _block_spec((1, Cp), lambda i: (0, 0), single_buffer=True),
        ],
        out_specs=_block_spec((row_tile, Cp), lambda i: (i, 0)),
        compiler_params=pltpu.CompilerParams(
            dimension_semantics=("parallel",),     # independent tiles -> megacore
            vmem_limit_bytes=vmem_limit),
        cost_estimate=cost2,
    )(mx2d, mn2d, scale, shift)

    # Rows are (n, ph, pw) raster order -> back to NCHW; drop padding.
    # TODO(synk): this final slice+transpose is an extra XLA HBM pass; return the
    # NHWC / padded (n_windows, Cp) slab directly if the consumer can take it.
    out = out2d[:n_windows, :Cout].reshape(N, PH, PW, Cout).transpose(0, 3, 1, 2)
    return out


def ref_forward(x, w, b, gamma, beta, *, conv_stride, conv_padding,
                pool_kernel, pool_stride, eps=1e-5):
    conv = jax.lax.conv_general_dilated(
        x, w, window_strides=(conv_stride, conv_stride),
        padding=[(conv_padding, conv_padding)] * 2,
        dimension_numbers=("NCHW", "OIHW", "NCHW")) + b[None, :, None, None]
    mean = conv.mean(axis=(0, 2, 3), keepdims=True)
    var = ((conv - mean) ** 2).mean(axis=(0, 2, 3), keepdims=True)
    y = (conv - mean) / jnp.sqrt(var + eps) * gamma[None, :, None, None] \
        + beta[None, :, None, None]
    pooled = jax.lax.reduce_window(
        y, -jnp.inf, jax.lax.max,
        window_dimensions=(1, 1, pool_kernel, pool_kernel),
        window_strides=(1, 1, pool_stride, pool_stride),
        padding="VALID")
    return jnp.maximum(pooled, 0.0)


if __name__ == "__main__":
    N, Cin, H, W = 2, 4, 16, 16
    Cout, KH, KW = 8, 3, 3
    conv_stride, conv_padding = 1, 1
    pool_kernel, pool_stride, pool_padding = 2, 2, 0

    key = jax.random.PRNGKey(0)
    kx, kw, kb = jax.random.split(key, 3)
    x = jax.random.normal(kx, (N, Cin, H, W), dtype=jnp.float32)

    # Deterministic PyTorch-style Conv2d init: U(-1/sqrt(fan_in), 1/sqrt(fan_in)).
    fan_in = Cin * KH * KW
    bound = 1.0 / math.sqrt(fan_in)
    conv_w = jax.random.uniform(kw, (Cout, Cin, KH, KW), jnp.float32, -bound, bound)
    conv_b = jax.random.uniform(kb, (Cout,), jnp.float32, -bound, bound)
    # Mixed-sign gamma / nonzero beta so both the max- and min-branches of the
    # folded BN+pool kernel are exercised by the numeric check.
    bn_gamma = jnp.asarray([1.0, -0.5, 1.5, -1.0, 0.75, 1.25, -0.25, 0.5], jnp.float32)
    bn_beta = jnp.asarray([0.1, -0.2, 0.0, 0.3, -0.1, 0.05, 0.2, -0.05], jnp.float32)

    # row_tile=32 forces a multi-step grid even at this toy size so the tiled /
    # accumulator path (pl.when init, cross-tile stats, 2-way parallel split) runs.
    out = conv_block_forward(
        x, conv_w, conv_b, bn_gamma, bn_beta,
        conv_stride=conv_stride, conv_padding=conv_padding,
        pool_kernel=pool_kernel, pool_stride=pool_stride,
        pool_padding=pool_padding, row_tile=32)
    out = jax.block_until_ready(out)

    ref = ref_forward(x, conv_w, conv_b, bn_gamma, bn_beta,
                      conv_stride=conv_stride, conv_padding=conv_padding,
                      pool_kernel=pool_kernel, pool_stride=pool_stride)
    assert out.shape == (N, Cout, H // pool_stride, W // pool_stride), out.shape
    # bf16 matmul operands (f32 accumulate) -> looser tolerance than a pure-f32 path.
    assert jnp.allclose(out, ref, atol=2e-2, rtol=2e-2), \
        float(jnp.max(jnp.abs(out - ref)))
    print("KERNEL_OK")
</pallas_src>

<mosaic_0001>
module attributes {stable_mosaic.version = 11 : i64} {
  func.func @conv_stats_kernel(%arg0: i32, %arg1: i32, %arg2: memref<4x32x128xbf16, #tpu.memory_space<vmem>>, %arg3: memref<128x128xbf16, #tpu.memory_space<vmem>>, %arg4: memref<32x128xf32, #tpu.memory_space<vmem>>, %arg5: memref<32x128xf32, #tpu.memory_space<vmem>>, %arg6: memref<8x128xf32, #tpu.memory_space<vmem>>, %arg7: memref<8x128xf32, #tpu.memory_space<vmem>>) attributes {dimension_semantics = [#tpu.dimension_semantics<parallel>, #tpu.dimension_semantics<arbitrary>], iteration_bounds = array<i64: 2, 2>, scalar_prefetch = 0 : i64, scratch_operands = 0 : i64, tpu.core_type = #tpu.core_type<tc>, window_params = [{transform_indices = @transform_0, window_bounds = array<i64: 4, 32, 128>}, {pipeline_mode = #tpu.pipeline_mode<synchronous>, transform_indices = @transform_1, window_bounds = array<i64: 128, 128>}, {transform_indices = @transform_2, window_bounds = array<i64: 32, 128>}, {transform_indices = @transform_3, window_bounds = array<i64: 32, 128>}, {transform_indices = @transform_4, window_bounds = array<i64: 8, 128>}, {transform_indices = @transform_5, window_bounds = array<i64: 8, 128>}]} {
    %c0_i32 = arith.constant 0 : i32
    %0 = arith.cmpi eq, %arg1, %c0_i32 : i32
    %1 = arith.extui %0 : i1 to i32
    %c0_i32_0 = arith.constant 0 : i32
    %2 = arith.cmpi ne, %1, %c0_i32_0 : i32
    scf.if %2 {
      %cst_34 = arith.constant 0.000000e+00 : f32
      %58 = vector.broadcast %cst_34 : f32 to vector<8x128xf32>
      %c0_35 = arith.constant 0 : index
      %c0_36 = arith.constant 0 : index
      %59 = vector.load %arg6[%c0_35, %c0_36] : memref<8x128xf32, #tpu.memory_space<vmem>>, vector<8x128xf32>
      tpu.vector_store %arg6[%c0_35, %c0_36], %58 {strides = array<i32>} : memref<8x128xf32, #tpu.memory_space<vmem>>, vector<8x128xf32>,
      %cst_37 = arith.constant 0.000000e+00 : f32
      %60 = vector.broadcast %cst_37 : f32 to vector<8x128xf32>
      %c0_38 = arith.constant 0 : index
      %c0_39 = arith.constant 0 : index
      %61 = vector.load %arg7[%c0_38, %c0_39] : memref<8x128xf32, #tpu.memory_space<vmem>>, vector<8x128xf32>
      tpu.vector_store %arg7[%c0_38, %c0_39], %60 {strides = array<i32>} : memref<8x128xf32, #tpu.memory_space<vmem>>, vector<8x128xf32>,
    } else {
    }
    %c0 = arith.constant 0 : index
    %c0_1 = arith.constant 0 : index
    %3 = vector.load %arg3[%c0, %c0_1] : memref<128x128xbf16, #tpu.memory_space<vmem>>, vector<128x128xbf16>
    %c0_2 = arith.constant 0 : index
    %c0_3 = arith.constant 0 : index
    %c0_4 = arith.constant 0 : index
    %4 = vector.load %arg2[%c0_2, %c0_3, %c0_4] : memref<4x32x128xbf16, #tpu.memory_space<vmem>>, vector<1x32x128xbf16>
    %5 = vector.shape_cast %4 : vector<1x32x128xbf16> to vector<32x128xbf16>
    %cst = arith.constant dense<0.000000e+00> : vector<32x128xf32>
    %6 = tpu.matmul %5, %3, %cst {dimension_numbers = #tpu.dot_dimension_numbers<[1], [0], [0], [1], [0, 0, 1, 1], [], []>} : vector<32x128xbf16>, vector<128x128xbf16>, vector<32x128xf32> -> vector<32x128xf32>
    %cst_5 = arith.constant dense<0.000000e+00> : vector<128xf32>
    %7 = vector.multi_reduction <add>, %6, %cst_5 [0] : vector<32x128xf32> to vector<128xf32>
    %8 = vector.shape_cast %7 : vector<128xf32> to vector<1x128xf32>
    %9 = arith.mulf %6, %6 : vector<32x128xf32>
    %cst_6 = arith.constant dense<0.000000e+00> : vector<128xf32>
    %10 = vector.multi_reduction <add>, %9, %cst_6 [0] : vector<32x128xf32> to vector<128xf32>
    %11 = vector.shape_cast %10 : vector<128xf32> to vector<1x128xf32>
    %c1 = arith.constant 1 : index
    %c0_7 = arith.constant 0 : index
    %c0_8 = arith.constant 0 : index
    %12 = vector.load %arg2[%c1, %c0_7, %c0_8] : memref<4x32x128xbf16, #tpu.memory_space<vmem>>, vector<1x32x128xbf16>
    %13 = vector.shape_cast %12 : vector<1x32x128xbf16> to vector<32x128xbf16>
    %cst_9 = arith.constant dense<0.000000e+00> : vector<32x128xf32>
    %14 = tpu.matmul %13, %3, %cst_9 {dimension_numbers = #tpu.dot_dimension_numbers<[1], [0], [0], [1], [0, 0, 1, 1], [], []>} : vector<32x128xbf16>, vector<128x128xbf16>, vector<32x128xf32> -> vector<32x128xf32>
    %15 = arith.maximumf %6, %14 : vector<32x128xf32>
    %16 = arith.minimumf %6, %14 : vector<32x128xf32>
    %cst_10 = arith.constant dense<0.000000e+00> : vector<128xf32>
    %17 = vector.multi_reduction <add>, %14, %cst_10 [0] : vector<32x128xf32> to vector<128xf32>
    %18 = vector.shape_cast %17 : vector<128xf32> to vector<1x128xf32>
    %19 = arith.addf %8, %18 : vector<1x128xf32>
    %20 = arith.mulf %14, %14 : vector<32x128xf32>
    %cst_11 = arith.constant dense<0.000000e+00> : vector<128xf32>
    %21 = vector.multi_reduction <add>, %20, %cst_11 [0] : vector<32x128xf32> to vector<128xf32>
    %22 = vector.shape_cast %21 : vector<128xf32> to vector<1x128xf32>
    %23 = arith.addf %11, %22 : vector<1x128xf32>
    %c2 = arith.constant 2 : index
    %c0_12 = arith.constant 0 : index
    %c0_13 = arith.constant 0 : index
    %24 = vector.load %arg2[%c2, %c0_12, %c0_13] : memref<4x32x128xbf16, #tpu.memory_space<vmem>>, vector<1x32x128xbf16>
    %25 = vector.shape_cast %24 : vector<1x32x128xbf16> to vector<32x128xbf16>
    %cst_14 = arith.constant dense<0.000000e+00> : vector<32x128xf32>
    %26 = tpu.matmul %25, %3, %cst_14 {dimension_numbers = #tpu.dot_dimension_numbers<[1], [0], [0], [1], [0, 0, 1, 1], [], []>} : vector<32x128xbf16>, vector<128x128xbf16>, vector<32x128xf32> -> vector<32x128xf32>
    %27 = arith.maximumf %15, %26 : vector<32x128xf32>
    %28 = arith.minimumf %16, %26 : vector<32x128xf32>
    %cst_15 = arith.constant dense<0.000000e+00> : vector<128xf32>
    %29 = vector.multi_reduction <add>, %26, %cst_15 [0] : vector<32x128xf32> to vector<128xf32>
    %30 = vector.shape_cast %29 : vector<128xf32> to vector<1x128xf32>
    %31 = arith.addf %19, %30 : vector<1x128xf32>
    %32 = arith.mulf %26, %26 : vector<32x128xf32>
    %cst_16 = arith.constant dense<0.000000e+00> : vector<128xf32>
    %33 = vector.multi_reduction <add>, %32, %cst_16 [0] : vector<32x128xf32> to vector<128xf32>
    %34 = vector.shape_cast %33 : vector<128xf32> to vector<1x128xf32>
    %35 = arith.addf %23, %34 : vector<1x128xf32>
    %c3 = arith.constant 3 : index
    %c0_17 = arith.constant 0 : index
    %c0_18 = arith.constant 0 : index
    %36 = vector.load %arg2[%c3, %c0_17, %c0_18] : memref<4x32x128xbf16, #tpu.memory_space<vmem>>, vector<1x32x128xbf16>
    %37 = vector.shape_cast %36 : vector<1x32x128xbf16> to vector<32x128xbf16>
    %cst_19 = arith.constant dense<0.000000e+00> : vector<32x128xf32>
    %38 = tpu.matmul %37, %3, %cst_19 {dimension_numbers = #tpu.dot_dimension_numbers<[1], [0], [0], [1], [0, 0, 1, 1], [], []>} : vector<32x128xbf16>, vector<128x128xbf16>, vector<32x128xf32> -> vector<32x128xf32>
    %39 = arith.maximumf %27, %38 : vector<32x128xf32>
    %40 = arith.minimumf %28, %38 : vector<32x128xf32>
    %cst_20 = arith.constant dense<0.000000e+00> : vector<128xf32>
    %41 = vector.multi_reduction <add>, %38, %cst_20 [0] : vector<32x128xf32> to vector<128xf32>
    %42 = vector.shape_cast %41 : vector<128xf32> to vector<1x128xf32>
    %43 = arith.addf %31, %42 : vector<1x128xf32>
    %44 = arith.mulf %38, %38 : vector<32x128xf32>
    %cst_21 = arith.constant dense<0.000000e+00> : vector<128xf32>
    %45 = vector.multi_reduction <add>, %44, %cst_21 [0] : vector<32x128xf32> to vector<128xf32>
    %46 = vector.shape_cast %45 : vector<128xf32> to vector<1x128xf32>
    %47 = arith.addf %35, %46 : vector<1x128xf32>
    %c0_22 = arith.constant 0 : index
    %c0_23 = arith.constant 0 : index
    %48 = vector.load %arg4[%c0_22, %c0_23] : memref<32x128xf32, #tpu.memory_space<vmem>>, vector<32x128xf32>
    tpu.vector_store %arg4[%c0_22, %c0_23], %39 {strides = array<i32>} : memref<32x128xf32, #tpu.memory_space<vmem>>, vector<32x128xf32>,
    %c0_24 = arith.constant 0 : index
    %c0_25 = arith.constant 0 : index
    %49 = vector.load %arg5[%c0_24, %c0_25] : memref<32x128xf32, #tpu.memory_space<vmem>>, vector<32x128xf32>
    tpu.vector_store %arg5[%c0_24, %c0_25], %40 {strides = array<i32>} : memref<32x128xf32, #tpu.memory_space<vmem>>, vector<32x128xf32>,
    %c0_26 = arith.constant 0 : index
    %c0_27 = arith.constant 0 : index
    %50 = vector.load %arg6[%c0_26, %c0_27] : memref<8x128xf32, #tpu.memory_space<vmem>>, vector<8x128xf32>
    %51 = vector.broadcast %43 : vector<1x128xf32> to vector<8x128xf32>
    %52 = arith.addf %50, %51 : vector<8x128xf32>
    %c0_28 = arith.constant 0 : index
    %c0_29 = arith.constant 0 : index
    %53 = vector.load %arg6[%c0_28, %c0_29] : memref<8x128xf32, #tpu.memory_space<vmem>>, vector<8x128xf32>
    tpu.vector_store %arg6[%c0_28, %c0_29], %52 {strides = array<i32>} : memref<8x128xf32, #tpu.memory_space<vmem>>, vector<8x128xf32>,
    %c0_30 = arith.constant 0 : index
    %c0_31 = arith.constant 0 : index
    %54 = vector.load %arg7[%c0_30, %c0_31] : memref<8x128xf32, #tpu.memory_space<vmem>>, vector<8x128xf32>
    %55 = vector.broadcast %47 : vector<1x128xf32> to vector<8x128xf32>
    %56 = arith.addf %54, %55 : vector<8x128xf32>
    %c0_32 = arith.constant 0 : index
    %c0_33 = arith.constant 0 : index
    %57 = vector.load %arg7[%c0_32, %c0_33] : memref<8x128xf32, #tpu.memory_space<vmem>>, vector<8x128xf32>
    tpu.vector_store %arg7[%c0_32, %c0_33], %56 {strides = array<i32>} : memref<8x128xf32, #tpu.memory_space<vmem>>, vector<8x128xf32>,
    return
  }
  func.func @transform_0(%arg0: i32, %arg1: i32) -> (i32, i32, i32) {
    %c2_i32 = arith.constant 2 : i32
    %0 = arith.muli %arg0, %c2_i32 : i32
    %1 = arith.addi %0, %arg1 : i32
    %c0_i32 = arith.constant 0 : i32
    %c0_i32_0 = arith.constant 0 : i32
    %c0_i32_1 = arith.constant 0 : i32
    return %c0_i32, %1, %c0_i32_0 : i32, i32, i32
  }
  func.func @transform_1(%arg0: i32, %arg1: i32) -> (i32, i32) {
    %c0_i32 = arith.constant 0 : i32
    %c0_i32_0 = arith.constant 0 : i32
    %c0_i32_1 = arith.constant 0 : i32
    return %c0_i32, %c0_i32_0 : i32, i32
  }
  func.func @transform_2(%arg0: i32, %arg1: i32) -> (i32, i32) {
    %c2_i32 = arith.constant 2 : i32
    %0 = arith.muli %arg0, %c2_i32 : i32
    %1 = arith.addi %0, %arg1 : i32
    %c0_i32 = arith.constant 0 : i32
    %c0_i32_0 = arith.constant 0 : i32
    return %1, %c0_i32 : i32, i32
  }
  func.func @transform_3(%arg0: i32, %arg1: i32) -> (i32, i32) {
    %c2_i32 = arith.constant 2 : i32
    %0 = arith.muli %arg0, %c2_i32 : i32
    %1 = arith.addi %0, %arg1 : i32
    %c0_i32 = arith.constant 0 : i32
    %c0_i32_0 = arith.constant 0 : i32
    return %1, %c0_i32 : i32, i32
  }
  func.func @transform_4(%arg0: i32, %arg1: i32) -> (i32, i32) {
    %c0_i32 = arith.constant 0 : i32
    %c0_i32_0 = arith.constant 0 : i32
    return %arg0, %c0_i32 : i32, i32
  }
  func.func @transform_5(%arg0: i32, %arg1: i32) -> (i32, i32) {
    %c0_i32 = arith.constant 0 : i32
    %c0_i32_0 = arith.constant 0 : i32
    return %arg0, %c0_i32 : i32, i32
  }
}

</mosaic_0001>

<llo_original>
// kernel: tpu_custom_call.1
$region0: #{tpu_custom_call.1}
  #allocation0 [shape = 'u32[]', space=smem, size = 0x4, offset = 0x4, fixed_abs, tag = 'smem constant byte address 0x4 - core index']
  #allocation1 [shape = 'u32[144,128]{1,0:T(1,128)}', space=vmem, size = 0x12000, scoped, tag = 'internal scratch']
  #allocation13 [shape = 's32[]', space=sflag, size = 0x4, offset = 0, fixed_abs, tag = 'sflag constant byte address 0x0 - dummy sync flag']
  %s0 = inlined_call_operand.hbm [shape: bf16[4,128,128], index: 0, kind: input, shape index: {}]
  %s1 = inlined_call_operand.hbm [shape: bf16[128,128], index: 1, kind: input, shape index: {}]
  %s2 = inlined_call_operand.hbm [shape: f32[128,128], index: 2, kind: output, shape index: {0}]
  %s3 = inlined_call_operand.hbm [shape: f32[128,128], index: 3, kind: output, shape index: {1}]
  %s4 = inlined_call_operand.hbm [shape: f32[16,128], index: 4, kind: output, shape index: {2}]
  %s5 = inlined_call_operand.hbm [shape: f32[16,128], index: 5, kind: output, shape index: {3}]
  %6 = xla_tuple %s2, %s3, %s4, %s5
  %s7 = sld [smem:[#allocation0]]
  $region77: #{tpu_custom_call.1} parent=0
    _
  %s9 = ssub.s32 1, %s7
  %s10 = scalar_select 0, %s9, %s7
  $region1: #{tpu_custom_call.1} parent=0
    #allocation2 [shape = 'u8[65536]{0}', space=vmem, size = 0x10000, scoped, tag = 'input window, operand 0']
    #allocation3 [shape = 's32[2]{0}', space=sflag, size = 0x8, scoped, tag = 'scoped memory for tpu_custom_call.1']
    #allocation4 [shape = 's32[2]{0}', space=sflag, size = 0x8, scoped, tag = 'scoped memory for tpu_custom_call.1']
    #allocation5 [shape = 'u8[32768]{0}', space=vmem, size = 0x8000, scoped, tag = 'input window, operand 1, single buffered']
    #allocation6 [shape = 's32[1]{0}', space=sflag, size = 0x4, scoped, tag = 'scoped memory for tpu_custom_call.1']
    #allocation7 [shape = 'u8[32768]{0}', space=vmem, size = 0x8000, scoped, tag = 'output window, operand 0']
    #allocation8 [shape = 'u8[32768]{0}', space=vmem, size = 0x8000, scoped, tag = 'output window, operand 1']
    #allocation9 [shape = 's32[2]{0}', space=sflag, size = 0x8, scoped, tag = 'scoped memory for tpu_custom_call.1']
    #allocation10 [shape = 'u8[8192]{0}', space=vmem, size = 0x2000, scoped, tag = 'output window, operand 2']
    #allocation11 [shape = 'u8[8192]{0}', space=vmem, size = 0x2000, scoped, tag = 'output window, operand 3']
    #allocation12 [shape = 's32[2]{0}', space=sflag, size = 0x8, scoped, tag = 'scoped memory for tpu_custom_call.1']
    %11 = vsyncpa [#allocation3], 0
    %s12 = scalar_lea.sflag [#allocation3], 1
    %13 = vsyncpa %s12, 0
    %14 = vsyncpa [#allocation6], 0
    %15 = vsyncpa [#allocation4], 0
    %s16 = scalar_lea.sflag [#allocation4], 1
    %17 = vsyncpa %s16, 0
    %18 = vsyncpa [#allocation9], 0
    %s19 = scalar_lea.sflag [#allocation9], 1
    %20 = vsyncpa %s19, 0
    %21 = vsyncpa [#allocation12], 0
    %s22 = scalar_lea.sflag [#allocation12], 1
    %23 = vsyncpa %s22, 0
    loop: start=0, step=1, limit=6
    $region2: #{tpu_custom_call.1} parent=1 // loop_pre_header
      _
    $region3: #{tpu_custom_call.1} parent=1 // loop_header
      %s25 = sphi 0, %s29
      %p26 = scmp.ge.s32.totalorder %s25, 6
      %s32 = sphi 0, %s44
      %s33 = sphi 0, %s40
      %s34 = sphi 0, %s32
      %s35 = sphi 0, %s33
      %s36 = sphi 0, %s34
      %s37 = sphi 0, %s35
      %s51 = sphi 0, %s53
      %s54 = sphi 0, %s51
      %s55 = sphi 0, %s54
      %s71 = sphi 0, %s55
      %s75 = sphi 0, %s75
      %s77 = sphi 0, %s75
      %s78 = sphi 0, %s77
      %s92 = sphi 0, %s78
      %s102 = sphi 0, %s104
      %s105 = sphi 0, %s102
      %s106 = sphi 0, %s105
      %s122 = sphi 0, %s106
      %s132 = sphi 0, %s134
      %s135 = sphi 0, %s132
      %s136 = sphi 0, %s135
      %s152 = sphi 0, %s136
      %s158 = sphi 0, %s160
      %s161 = sphi 0, %s158
      %s162 = sphi 0, %s161
      %s178 = sphi 0, %s162
      %s184 = sphi 0, %s186
      %s187 = sphi 0, %s184
      %s188 = sphi 0, %s187
      %s204 = sphi 0, %s188
    $region4: #{tpu_custom_call.1} parent=1 // loop_header_branch
      %28 = sbr.rel (%p26) target = $region8
    $region5: #{tpu_custom_call.1} parent=1 // loop_body
      %s30 = ssub.s32 %s25, 1
      %s31 = ssub.s32 %s25, 2
      %s38 = sadd.s32 1, %s33
      %p39 = scmp.ge.s32.totalorder %s38, 2
      %s40 = scalar_select %p39, 0, %s38
      %s41 = sadd.s32 1, %s32
      %s42 = scalar_select %p39, %s41, %s32
      %p43 = scmp.ge.s32.totalorder %s42, 2
      %s44 = scalar_select %p43, 0, %s42
      %s45 = smul.u32 %s32, 2
      %s46 = sadd.s32 %s45, %s33
      %s47 = smul.u32 %s44, 2
      %s48 = sadd.s32 %s47, %s40
      %s49 = ssub.s32 %s46, %s48
      %p50 = scmp.eq.s32.totalorder %s49, 0
      %s52 = sadd.s32 %s51, 1
      %s53 = scalar_select %p50, %s51, %s52
      %p56 = pneg %p50
      %p57 = scmp.eq.s32.totalorder %s25, 3
      %p58 = por %p56, %p57
      %p59 = scmp.ne.s32.totalorder %s51, %s54
      %p60 = scmp.eq.s32.totalorder %s25, 0
      %p61 = por %p59, %p60
      %p62 = scmp.ne.s32.totalorder %s51, %s54
      %p63 = scmp.eq.s32.totalorder %s30, 3
      %p64 = por %p62, %p63
      %p65 = scmp.ne.s32.totalorder %s54, %s55
      %p66 = scmp.eq.s32.totalorder %s30, 0
      %p67 = por %p65, %p66
      %p68 = scmp.ne.s32.totalorder %s54, %s55
      %p69 = scmp.eq.s32.totalorder %s31, 3
      %p70 = por %p68, %p69
      %p72 = scmp.ne.s32.totalorder %s55, %s71
      %p73 = scmp.eq.s32.totalorder %s31, 0
      %p74 = por %p72, %p73
      %s76 = sadd.s32 %s75, 1
      %p79 = scmp.eq.s32.totalorder %s25, 3
      %p80 = scmp.ne.s32.totalorder %s75, %s77
      %p81 = scmp.eq.s32.totalorder %s25, 0
      %p82 = por %p80, %p81
      %p83 = scmp.ne.s32.totalorder %s75, %s77
      %p84 = scmp.eq.s32.totalorder %s30, 3
      %p85 = por %p83, %p84
      %p86 = scmp.ne.s32.totalorder %s77, %s78
      %p87 = scmp.eq.s32.totalorder %s30, 0
      %p88 = por %p86, %p87
      %p89 = scmp.ne.s32.totalorder %s77, %s78
      %p90 = scmp.eq.s32.totalorder %s31, 3
      %p91 = por %p89, %p90
      %p93 = scmp.ne.s32.totalorder %s78, %s92
      %p94 = scmp.eq.s32.totalorder %s31, 0
      %p95 = por %p93, %p94
      %s96 = smul.u32 %s32, 2
      %s97 = sadd.s32 %s96, %s33
      %s98 = smul.u32 %s44, 2
      %s99 = sadd.s32 %s98, %s40
      %s100 = ssub.s32 %s97, %s99
      %p101 = scmp.eq.s32.totalorder %s100, 0
      %s103 = sadd.s32 %s102, 1
      %s104 = scalar_select %p101, %s102, %s103
      %p107 = pneg %p101
      %p108 = scmp.eq.s32.totalorder %s25, 3
      %p109 = por %p107, %p108
      %p110 = scmp.ne.s32.totalorder %s102, %s105
      %p111 = scmp.eq.s32.totalorder %s25, 0
      %p112 = por %p110, %p111
      %p113 = scmp.ne.s32.totalorder %s102, %s105
      %p114 = scmp.eq.s32.totalorder %s30, 3
      %p115 = por %p113, %p114
      %p116 = scmp.ne.s32.totalorder %s105, %s106
      %p117 = scmp.eq.s32.totalorder %s30, 0
      %p118 = por %p116, %p117
      %p119 = scmp.ne.s32.totalorder %s105, %s106
      %p120 = scmp.eq.s32.totalorder %s31, 3
      %p121 = por %p119, %p120
      %p123 = scmp.ne.s32.totalorder %s106, %s122
      %p124 = scmp.eq.s32.totalorder %s31, 0
      %p125 = por %p123, %p124
      %s126 = smul.u32 %s32, 2
      %s127 = sadd.s32 %s126, %s33
      %s128 = smul.u32 %s44, 2
      %s129 = sadd.s32 %s128, %s40
      %s130 = ssub.s32 %s127, %s129
      %p131 = scmp.eq.s32.totalorder %s130, 0
      %s133 = sadd.s32 %s132, 1
      %s134 = scalar_select %p131, %s132, %s133
      %p137 = pneg %p131
      %p138 = scmp.eq.s32.totalorder %s25, 3
      %p139 = por %p137, %p138
      %p140 = scmp.ne.s32.totalorder %s132, %s135
      %p141 = scmp.eq.s32.totalorder %s25, 0
      %p142 = por %p140, %p141
      %p143 = scmp.ne.s32.totalorder %s132, %s135
      %p144 = scmp.eq.s32.totalorder %s30, 3
      %p145 = por %p143, %p144
      %p146 = scmp.ne.s32.totalorder %s135, %s136
      %p147 = scmp.eq.s32.totalorder %s30, 0
      %p148 = por %p146, %p147
      %p149 = scmp.ne.s32.totalorder %s135, %s136
      %p150 = scmp.eq.s32.totalorder %s31, 3
      %p151 = por %p149, %p150
      %p153 = scmp.ne.s32.totalorder %s136, %s152
      %p154 = scmp.eq.s32.totalorder %s31, 0
      %p155 = por %p153, %p154
      %s156 = ssub.s32 %s32, %s44
      %p157 = scmp.eq.s32.totalorder %s156, 0
      %s159 = sadd.s32 %s158, 1
      %s160 = scalar_select %p157, %s158, %s159
      %p163 = pneg %p157
      %p164 = scmp.eq.s32.totalorder %s25, 3
      %p165 = por %p163, %p164
      %p166 = scmp.ne.s32.totalorder %s158, %s161
      %p167 = scmp.eq.s32.totalorder %s25, 0
      %p168 = por %p166, %p167
      %p169 = scmp.ne.s32.totalorder %s158, %s161
      %p170 = scmp.eq.s32.totalorder %s30, 3
      %p171 = por %p169, %p170
      %p172 = scmp.ne.s32.totalorder %s161, %s162
      %p173 = scmp.eq.s32.totalorder %s30, 0
      %p174 = por %p172, %p173
      %p175 = scmp.ne.s32.totalorder %s161, %s162
      %p176 = scmp.eq.s32.totalorder %s31, 3
      %p177 = por %p175, %p176
      %p179 = scmp.ne.s32.totalorder %s162, %s178
      %p180 = scmp.eq.s32.totalorder %s31, 0
      %p181 = por %p179, %p180
      %s182 = ssub.s32 %s32, %s44
      %p183 = scmp.eq.s32.totalorder %s182, 0
      %s185 = sadd.s32 %s184, 1
      %s186 = scalar_select %p183, %s184, %s185
      %p189 = pneg %p183
      %p190 = scmp.eq.s32.totalorder %s25, 3
      %p191 = por %p189, %p190
      %p192 = scmp.ne.s32.totalorder %s184, %s187
      %p193 = scmp.eq.s32.totalorder %s25, 0
      %p194 = por %p192, %p193
      %p195 = scmp.ne.s32.totalorder %s184, %s187
      %p196 = scmp.eq.s32.totalorder %s30, 3
      %p197 = por %p195, %p196
      %p198 = scmp.ne.s32.totalorder %s187, %s188
      %p199 = scmp.eq.s32.totalorder %s30, 0
      %p200 = por %p198, %p199
      %p201 = scmp.ne.s32.totalorder %s187, %s188
      %p202 = scmp.eq.s32.totalorder %s31, 3
      %p203 = por %p201, %p202
      %p205 = scmp.ne.s32.totalorder %s188, %s204
      %p206 = scmp.eq.s32.totalorder %s31, 0
      %p207 = por %p205, %p206
      %p208 = scmp.le.s32.totalorder 1, %s25
      %p209 = scmp.lt.s32.totalorder %s25, 5
      %p210 = pnand %p208, %p209
      %p211 = pneg %p210
      // Predicated region
      $region9: #{tpu_custom_call.1} parent=5 // pred_check
        _
      $region10: #{tpu_custom_call.1} parent=5 // pred_check_branch
        %213 = sbr.rel (%p210) target = $region12
      $region11: #{tpu_custom_call.1} parent=5 // pred_region
        %s214 = ssub.s32 %s25, 1
        // Predicated region
        $region13: #{tpu_custom_call.1} parent=11 // pred_check
          %p215 = pneg %p88
        $region14: #{tpu_custom_call.1} parent=11 // pred_check_branch
          %217 = sbr.rel (%p215) target = $region16
        $region15: #{tpu_custom_call.1} parent=11 // pred_region
          %s219 = ssub.s32 1024, 1024
          %220 = vsyncadd [#allocation6], %s219
          %s221 = sshll.u32 [#allocation5], 4
          %s222 = int_to_ptr.vmem [resolvable:$true] %s221
          %227 = dma.hbm_to_vmem [thread:$0]  %s1, 1024, %s222, [#allocation6], 64, 64, 4
        $region16: #{tpu_custom_call.1} parent=11 // pred_fallthru
          _
      $region12: #{tpu_custom_call.1} parent=5 // pred_fallthru
        _
      %p228 = scmp.lt.s32.totalorder %s25, 4
      // Predicated region
      $region17: #{tpu_custom_call.1} parent=5 // pred_check
        %p229 = pneg %p228
      $region18: #{tpu_custom_call.1} parent=5 // pred_check_branch
        %231 = sbr.rel (%p229) target = $region20
      $region19: #{tpu_custom_call.1} parent=5 // pred_region
        // Predicated region
        $region21: #{tpu_custom_call.1} parent=19 // pred_check
          %p232 = pneg %p61
        $region22: #{tpu_custom_call.1} parent=19 // pred_check_branch
          %234 = sbr.rel (%p232) target = $region24
        $region23: #{tpu_custom_call.1} parent=19 // pred_region
          #allocation14 [shape = 'u32[6]{0}', space=smem, size = 0x18, scoped, tag = 'DMA stride descriptor']
          %s235 = sand.u32 %s51, 1
          %s236 = scalar_lea.sflag [#allocation3], %s235
          %s237 = sand.u32 %s51, 1
          %s238 = smul.addr %s237, 64
          %s239 = scalar_lea.vmem [#allocation2], %s238
          %s240 = smul.u32 %s32, 2
          %s241 = sadd.s32 %s240, %s33
          %s242 = smul.u32 4, %s241
          %s244 = ssub.s32 1024, 1024
          %245 = vsyncadd %s236, %s244
          %s246 = smul.addr %s242, 64
          %s247 = scalar_lea.hbm %s0, %s246
          %s249 = sshll.u32 1, 14
          %s250 = sxor.u32 4294967295, %s249
          %s252 = sld [smem:[#allocation0]]
          %s253 = sadd.s32 2, %s252
          %s255 = sshll.u32 7, 26
          %s256 = sxor.u32 4294967295, %s255
          %s257 = sand.u32 0, %s256
          %s258 = sshll.u32 %s253, 26
          %s259 = sor.u32 %s257, %s258
          %s260 = sshll.u32 %s239, 4
          %s261 = int_to_ptr.vmem [resolvable:$true] %s260
          %267 = sst [smem:[#allocation14]] 1024
          %s268 = scalar_lea.smem [#allocation14], 1
          %269 = sst [smem:[%s268]] 256
          %s270 = scalar_lea.smem [#allocation14], 2
          %271 = sst [smem:[%s270]] 4
          %s272 = scalar_lea.smem [#allocation14], 3
          %273 = sst [smem:[%s272]] 64
          %s274 = scalar_lea.smem [#allocation14], 4
          %275 = sst [smem:[%s274]] 64
          %s276 = scalar_lea.smem [#allocation14], 5
          %277 = sst [smem:[%s276]] 4
          %279 = dma.general %s247, 1024, %s261, %s236, 131072, [#allocation14], %s259, 0
        $region24: #{tpu_custom_call.1} parent=19 // pred_fallthru
          _
      $region20: #{tpu_custom_call.1} parent=5 // pred_fallthru
        _
      %p280 = scmp.le.s32.totalorder 1, %s25
      %p281 = scmp.lt.s32.totalorder %s25, 5
      %p282 = pnand %p280, %p281
      %p283 = pneg %p282
      // Predicated region
      $region25: #{tpu_custom_call.1} parent=5 // pred_check
        _
      $region26: #{tpu_custom_call.1} parent=5 // pred_check_branch
        %285 = sbr.rel (%p282) target = $region28
      $region27: #{tpu_custom_call.1} parent=5 // pred_region
        %s286 = ssub.s32 %s25, 1
        %s287 = sand.u32 %s54, 1
        %s288 = scalar_lea.sflag [#allocation3], %s287
        %s289 = sand.u32 %s54, 1
        %s290 = smul.addr %s289, 64
        %s291 = scalar_lea.vmem [#allocation2], %s290
        // Predicated region
        $region29: #{tpu_custom_call.1} parent=27 // pred_check
          %p292 = pneg %p67
        $region30: #{tpu_custom_call.1} parent=27 // pred_check_branch
          %294 = sbr.rel (%p292) target = $region32
        $region31: #{tpu_custom_call.1} parent=27 // pred_region
          %295 = dma.done %s288, 1024
        $region32: #{tpu_custom_call.1} parent=27 // pred_fallthru
          _
        // Predicated region
        $region33: #{tpu_custom_call.1} parent=27 // pred_check
          %p296 = pneg %p88
        $region34: #{tpu_custom_call.1} parent=27 // pred_check_branch
          %298 = sbr.rel (%p296) target = $region36
        $region35: #{tpu_custom_call.1} parent=27 // pred_region
          %299 = dma.done [#allocation6], 1024
        $region36: #{tpu_custom_call.1} parent=27 // pred_fallthru
          _
        %s300 = sand.u32 %s54, 1
        %s301 = scalar_lea.sflag [#allocation3], %s300
        %s302 = sand.u32 %s54, 1
        %s303 = smul.addr %s302, 64
        %s304 = scalar_lea.vmem [#allocation2], %s303
        %p305 = pneg %p67
        %p306 = pneg %p64
        %p307 = pneg %p88
        %p308 = pneg %p85
        %p309 = pneg %p118
        %p310 = pneg %p115
        %s311 = sand.u32 %s105, 1
        %s312 = scalar_lea.sflag [#allocation4], %s311
        %s313 = sand.u32 %s105, 1
        %s314 = smul.addr %s313, 32
        %s315 = scalar_lea.vmem [#allocation7], %s314
        %p316 = pneg %p148
        %p317 = pneg %p145
        %s318 = sand.u32 %s30, 1
        %s319 = scalar_lea.sflag [#allocation9], %s318
        %s320 = sand.u32 %s135, 1
        %s321 = smul.addr %s320, 32
        %s322 = scalar_lea.vmem [#allocation8], %s321
        %p323 = pneg %p174
        %p324 = pneg %p171
        %s325 = sand.u32 %s30, 1
        %s326 = scalar_lea.sflag [#allocation9], %s325
        %s327 = sand.u32 %s161, 1
        %s328 = smul.addr %s327, 8
        %s329 = scalar_lea.vmem [#allocation10], %s328
        %p330 = pneg %p200
        %p331 = pneg %p197
        %s332 = sand.u32 %s187, 1
        %s333 = scalar_lea.sflag [#allocation12], %s332
        %s334 = sand.u32 %s187, 1
        %s335 = smul.addr %s334, 8
        %s336 = scalar_lea.vmem [#allocation11], %s335
        %s337 = smul.u32 %s34, 2
        %s338 = sadd.s32 %s337, %s35
        %s339 = smul.u32 4, %s338
        %s340 = smul.u32 %s34, 2
        %s341 = sadd.s32 %s340, %s35
        %s342 = smul.u32 4, %s341
        %s343 = smul.u32 %s34, 2
        %s344 = sadd.s32 %s343, %s35
        %s345 = smul.u32 4, %s344
        %p347 = scmp.eq.s32.totalorder %s35, 0
        // Predicated region
        $region37: #{tpu_custom_call.1} parent=27 // pred_check
          %p348 = pneg %p347
        $region38: #{tpu_custom_call.1} parent=27 // pred_check_branch
          %350 = sbr.rel (%p348) target = $region40
        $region39: #{tpu_custom_call.1} parent=27 // pred_region
          %351 = vst [vmem:[%s329] sm:$0xff] 0.0
          %352 = vst [vmem:[%s336] sm:$0xff] 0.0
        $region40: #{tpu_custom_call.1} parent=27 // pred_fallthru
          _
        %v353 = vld [vmem:[#allocation5] sm:$0xf]
        %v354 = vld [vmem:[#allocation5 + $0x4] sm:$0xf]
        %v355 = vld [vmem:[#allocation5 + $0x8] sm:$0xf]
        %v356 = vld [vmem:[#allocation5 + $0xc] sm:$0xf]
        %v357 = vld [vmem:[#allocation5 + $0x10] sm:$0xf]
        %v358 = vld [vmem:[#allocation5 + $0x14] sm:$0xf]
        %v359 = vld [vmem:[#allocation5 + $0x18] sm:$0xf]
        %v360 = vld [vmem:[#allocation5 + $0x1c] sm:$0xf]
        %v361 = vld [vmem:[#allocation5 + $0x20] sm:$0xf]
        %v362 = vld [vmem:[#allocation5 + $0x24] sm:$0xf]
        %v363 = vld [vmem:[#allocation5 + $0x28] sm:$0xf]
        %v364 = vld [vmem:[#allocation5 + $0x2c] sm:$0xf]
        %v365 = vld [vmem:[#allocation5 + $0x30] sm:$0xf]
        %v366 = vld [vmem:[#allocation5 + $0x34] sm:$0xf]
        %v367 = vld [vmem:[#allocation5 + $0x38] sm:$0xf]
        %v368 = vld [vmem:[#allocation5 + $0x3c] sm:$0xf]
        %v369 = vld [vmem:[%s291] sm:$0xf]
        %v370 = vld [vmem:[%s291 + $0x4] sm:$0xf]
        %v371 = vld [vmem:[%s291 + $0x8] sm:$0xf]
        %v372 = vld [vmem:[%s291 + $0xc] sm:$0xf]
        %v377 = vunpack.c.l.b16 %v369
        %v378 = vunpack.c.l.b16 %v370
        %v379 = vunpack.c.l.b16 %v371
        %v380 = vunpack.c.l.b16 %v372
        %v381 = vpack.c.b16 %v378, %v377
        %v382 = vpack.c.b16 %v380, %v379
        %v401 = vunpack.c.l.b16 %v353
        %v402 = vunpack.c.l.b16 %v354
        %v403 = vunpack.c.l.b16 %v355
        %v404 = vunpack.c.l.b16 %v356
        %v405 = vunpack.c.l.b16 %v357
        %v406 = vunpack.c.l.b16 %v358
        %v407 = vunpack.c.l.b16 %v359
        %v408 = vunpack.c.l.b16 %v360
        %v409 = vunpack.c.l.b16 %v361
        %v410 = vunpack.c.l.b16 %v362
        %v411 = vunpack.c.l.b16 %v363
        %v412 = vunpack.c.l.b16 %v364
        %v413 = vunpack.c.l.b16 %v365
        %v414 = vunpack.c.l.b16 %v366
        %v415 = vunpack.c.l.b16 %v367
        %v416 = vunpack.c.l.b16 %v368
        %v417 = vpack.c.b16 %v402, %v401
        %v418 = vpack.c.b16 %v404, %v403
        %v419 = vpack.c.b16 %v406, %v405
        %v420 = vpack.c.b16 %v408, %v407
        %v421 = vpack.c.b16 %v410, %v409
        %v422 = vpack.c.b16 %v412, %v411
        %v423 = vpack.c.b16 %v414, %v413
        %v424 = vpack.c.b16 %v416, %v415
        %433 = vmatprep.subr.bf16.mxu0 0
        %434 = vmatpush1.bf16.msra.mxu0 %v424
        %435 = vmatprep.subr.bf16.mxu0 0
        %436 = vmatpush1.bf16.msra.mxu0 %v423
        %437 = vmatprep.subr.bf16.mxu0 0
        %438 = vmatpush1.bf16.msra.mxu0 %v422
        %439 = vmatprep.subr.bf16.mxu0 0
        %440 = vmatpush1.bf16.msra.mxu0 %v421
        %441 = vmatprep.subr.bf16.mxu0 0
        %442 = vmatpush1.bf16.msra.mxu0 %v420
        %443 = vmatprep.subr.bf16.mxu0 0
        %444 = vmatpush1.bf16.msra.mxu0 %v419
        %445 = vmatprep.subr.bf16.mxu0 0
        %446 = vmatpush1.bf16.msra.mxu0 %v418
        %447 = vmatprep.subr.bf16.mxu0 0
        %448 = vmatpush1.bf16.msra.mxu0 %v417
        %449 = vmatprep.subr.bf16.mxu0 0
        %450 = vmatpush2.bf16.msra.mxu0 0
        %451 = vmatprep.subr.bf16.mxu0 0
        %452 = vmatpush2.bf16.msra.mxu0 0
        %453 = vmatprep.subr.bf16.mxu0 0
        %454 = vmatpush2.bf16.msra.mxu0 0
        %455 = vmatprep.subr.bf16.mxu0 0
        %456 = vmatpush2.bf16.msra.mxu0 0
        %457 = vmatprep.subr.bf16.mxu0 0
        %458 = vmatpush2.bf16.msra.mxu0 0
        %459 = vmatprep.subr.bf16.mxu0 0
        %460 = vmatpush2.bf16.msra.mxu0 0
        %461 = vmatprep.subr.bf16.mxu0 0
        %462 = vmatpush2.bf16.msra.mxu0 0
        %463 = vmatprep.subr.bf16.mxu0 0
        %464 = vmatpush2.bf16.msra.mxu0 0
        %465 = vmatprep.mubr.bf16.mxu0 0
        %466 = vmatmul.mubr.bf16.gmra.mxu0 %v381
        %v467 = vpop.f32.mrf.mxu0
        %v468 = vadd.f32 0.0, %v467
        %v469 = vpop.f32.mrf.mxu0
        %v470 = vpop.f32.mrf.mxu0
        %v471 = vadd.f32 0.0, %v470
        %v472 = vpop.f32.mrf.mxu0
        %473 = vmatprep.mubr.bf16.mxu0 0
        %474 = vmatmul.mubr.bf16.gmra.mxu0 %v382
        %v475 = vpop.f32.mrf.mxu0
        %v476 = vadd.f32 0.0, %v475
        %v477 = vpop.f32.mrf.mxu0
        %v478 = vpop.f32.mrf.mxu0
        %v479 = vadd.f32 0.0, %v478
        %v480 = vpop.f32.mrf.mxu0
        %481 = vdwg.mxu0
        %v482 = vadd.f32 %v468, %v471
        %v483 = vadd.f32 %v482, %v476
        %v484 = vadd.f32 %v483, %v479
        %v485 = vrot.slane %v484, 4
        %v486 = vadd.f32 %v484, %v485
        %v487 = vrot.slane %v486, 2
        %v488 = vadd.f32 %v486, %v487
        %v489 = vrot.slane %v488, 1
        %v490 = vadd.f32 %v488, %v489
        %v491 = vmul.f32 %v468, %v468
        %v492 = vmul.f32 %v471, %v471
        %v493 = vmul.f32 %v476, %v476
        %v494 = vmul.f32 %v479, %v479
        %v495 = vadd.f32 %v491, %v492
        %v496 = vadd.f32 %v495, %v493
        %v497 = vadd.f32 %v496, %v494
        %v498 = vrot.slane %v497, 4
        %v499 = vadd.f32 %v497, %v498
        %v500 = vrot.slane %v499, 2
        %v501 = vadd.f32 %v499, %v500
        %v502 = vrot.slane %v501, 1
        %v503 = vadd.f32 %v501, %v502
        %s504 = scalar_lea.vmem %s291, 16 [#allocation2]
        %v505 = vld [vmem:[%s504] sm:$0xf]
        %v506 = vld [vmem:[%s504 + $0x4] sm:$0xf]
        %v507 = vld [vmem:[%s504 + $0x8] sm:$0xf]
        %v508 = vld [vmem:[%s504 + $0xc] sm:$0xf]
        %v513 = vunpack.c.l.b16 %v505
        %v514 = vunpack.c.l.b16 %v506
        %v515 = vunpack.c.l.b16 %v507
        %v516 = vunpack.c.l.b16 %v508
        %v517 = vpack.c.b16 %v514, %v513
        %v518 = vpack.c.b16 %v516, %v515
        %521 = vmatprep.subr.bf16.mxu0 0
        %522 = vmatpush1.bf16.msra.mxu0 %v424
        %523 = vmatprep.subr.bf16.mxu0 0
        %524 = vmatpush1.bf16.msra.mxu0 %v423
        %525 = vmatprep.subr.bf16.mxu0 0
        %526 = vmatpush1.bf16.msra.mxu0 %v422
        %527 = vmatprep.subr.bf16.mxu0 0
        %528 = vmatpush1.bf16.msra.mxu0 %v421
        %529 = vmatprep.subr.bf16.mxu0 0
        %530 = vmatpush1.bf16.msra.mxu0 %v420
        %531 = vmatprep.subr.bf16.mxu0 0
        %532 = vmatpush1.bf16.msra.mxu0 %v419
        %533 = vmatprep.subr.bf16.mxu0 0
        %534 = vmatpush1.bf16.msra.mxu0 %v418
        %535 = vmatprep.subr.bf16.mxu0 0
        %536 = vmatpush1.bf16.msra.mxu0 %v417
        %537 = vmatprep.subr.bf16.mxu0 0
        %538 = vmatpush2.bf16.msra.mxu0 0
        %539 = vmatprep.subr.bf16.mxu0 0
        %540 = vmatpush2.bf16.msra.mxu0 0
        %541 = vmatprep.subr.bf16.mxu0 0
        %542 = vmatpush2.bf16.msra.mxu0 0
        %543 = vmatprep.subr.bf16.mxu0 0
        %544 = vmatpush2.bf16.msra.mxu0 0
        %545 = vmatprep.subr.bf16.mxu0 0
        %546 = vmatpush2.bf16.msra.mxu0 0
        %547 = vmatprep.subr.bf16.mxu0 0
        %548 = vmatpush2.bf16.msra.mxu0 0
        %549 = vmatprep.subr.bf16.mxu0 0
        %550 = vmatpush2.bf16.msra.mxu0 0
        %551 = vmatprep.subr.bf16.mxu0 0
        %552 = vmatpush2.bf16.msra.mxu0 0
        %553 = vmatprep.mubr.bf16.mxu0 0
        %554 = vmatmul.mubr.bf16.gmra.mxu0 %v517
        %v555 = vpop.f32.mrf.mxu0
        %v556 = vadd.f32 0.0, %v555
        %v557 = vpop.f32.mrf.mxu0
        %v558 = vpop.f32.mrf.mxu0
        %v559 = vadd.f32 0.0, %v558
        %v560 = vpop.f32.mrf.mxu0
        %561 = vmatprep.mubr.bf16.mxu0 0
        %562 = vmatmul.mubr.bf16.gmra.mxu0 %v518
        %v563 = vpop.f32.mrf.mxu0
        %v564 = vadd.f32 0.0, %v563
        %v565 = vpop.f32.mrf.mxu0
        %v566 = vpop.f32.mrf.mxu0
        %v567 = vadd.f32 0.0, %v566
        %v568 = vpop.f32.mrf.mxu0
        %569 = vdwg.mxu0
        %v570 = vmax.f32 %v468, %v556
        %v571 = vmax.f32 %v471, %v559
        %v572 = vmax.f32 %v476, %v564
        %v573 = vmax.f32 %v479, %v567
        %v574 = vmin.f32 %v468, %v556
        %v575 = vmin.f32 %v471, %v559
        %v576 = vmin.f32 %v476, %v564
        %v577 = vmin.f32 %v479, %v567
        %v578 = vadd.f32 %v556, %v559
        %v579 = vadd.f32 %v578, %v564
        %v580 = vadd.f32 %v579, %v567
        %v581 = vrot.slane %v580, 4
        %v582 = vadd.f32 %v580, %v581
        %v583 = vrot.slane %v582, 2
        %v584 = vadd.f32 %v582, %v583
        %v585 = vrot.slane %v584, 1
        %v586 = vadd.f32 %v584, %v585
        %v587 = vadd.f32 %v490, %v586
        %v588 = vmul.f32 %v556, %v556
        %v589 = vmul.f32 %v559, %v559
        %v590 = vmul.f32 %v564, %v564
        %v591 = vmul.f32 %v567, %v567
        %v592 = vadd.f32 %v588, %v589
        %v593 = vadd.f32 %v592, %v590
        %v594 = vadd.f32 %v593, %v591
        %v595 = vrot.slane %v594, 4
        %v596 = vadd.f32 %v594, %v595
        %v597 = vrot.slane %v596, 2
        %v598 = vadd.f32 %v596, %v597
        %v599 = vrot.slane %v598, 1
        %v600 = vadd.f32 %v598, %v599
        %v601 = vadd.f32 %v503, %v600
        %s602 = scalar_lea.vmem %s291, 32 [#allocation2]
        %v603 = vld [vmem:[%s602] sm:$0xf]
        %v604 = vld [vmem:[%s602 + $0x4] sm:$0xf]
        %v605 = vld [vmem:[%s602 + $0x8] sm:$0xf]
        %v606 = vld [vmem:[%s602 + $0xc] sm:$0xf]
        %v611 = vunpack.c.l.b16 %v603
        %v612 = vunpack.c.l.b16 %v604
        %v613 = vunpack.c.l.b16 %v605
        %v614 = vunpack.c.l.b16 %v606
        %v615 = vpack.c.b16 %v612, %v611
        %v616 = vpack.c.b16 %v614, %v613
        %619 = vmatprep.subr.bf16.mxu0 0
        %620 = vmatpush1.bf16.msra.mxu0 %v424
        %621 = vmatprep.subr.bf16.mxu0 0
        %622 = vmatpush1.bf16.msra.mxu0 %v423
        %623 = vmatprep.subr.bf16.mxu0 0
        %624 = vmatpush1.bf16.msra.mxu0 %v422
        %625 = vmatprep.subr.bf16.mxu0 0
        %626 = vmatpush1.bf16.msra.mxu0 %v421
        %627 = vmatprep.subr.bf16.mxu0 0
        %628 = vmatpush1.bf16.msra.mxu0 %v420
        %629 = vmatprep.subr.bf16.mxu0 0
        %630 = vmatpush1.bf16.msra.mxu0 %v419
        %631 = vmatprep.subr.bf16.mxu0 0
        %632 = vmatpush1.bf16.msra.mxu0 %v418
        %633 = vmatprep.subr.bf16.mxu0 0
        %634 = vmatpush1.bf16.msra.mxu0 %v417
        %635 = vmatprep.subr.bf16.mxu0 0
        %636 = vmatpush2.bf16.msra.mxu0 0
        %637 = vmatprep.subr.bf16.mxu0 0
        %638 = vmatpush2.bf16.msra.mxu0 0
        %639 = vmatprep.subr.bf16.mxu0 0
        %640 = vmatpush2.bf16.msra.mxu0 0
        %641 = vmatprep.subr.bf16.mxu0 0
        %642 = vmatpush2.bf16.msra.mxu0 0
        %643 = vmatprep.subr.bf16.mxu0 0
        %644 = vmatpush2.bf16.msra.mxu0 0
        %645 = vmatprep.subr.bf16.mxu0 0
        %646 = vmatpush2.bf16.msra.mxu0 0
        %647 = vmatprep.subr.bf16.mxu0 0
        %648 = vmatpush2.bf16.msra.mxu0 0
        %649 = vmatprep.subr.bf16.mxu0 0
        %650 = vmatpush2.bf16.msra.mxu0 0
        %651 = vmatprep.mubr.bf16.mxu0 0
        %652 = vmatmul.mubr.bf16.gmra.mxu0 %v615
        %v653 = vpop.f32.mrf.mxu0
        %v654 = vadd.f32 0.0, %v653
        %v655 = vpop.f32.mrf.mxu0
        %v656 = vpop.f32.mrf.mxu0
        %v657 = vadd.f32 0.0, %v656
        %v658 = vpop.f32.mrf.mxu0
        %659 = vmatprep.mubr.bf16.mxu0 0
        %660 = vmatmul.mubr.bf16.gmra.mxu0 %v616
        %v661 = vpop.f32.mrf.mxu0
        %v662 = vadd.f32 0.0, %v661
        %v663 = vpop.f32.mrf.mxu0
        %v664 = vpop.f32.mrf.mxu0
        %v665 = vadd.f32 0.0, %v664
        %v666 = vpop.f32.mrf.mxu0
        %667 = vdwg.mxu0
        %v668 = vmax.f32 %v570, %v654
        %v669 = vmax.f32 %v571, %v657
        %v670 = vmax.f32 %v572, %v662
        %v671 = vmax.f32 %v573, %v665
        %v672 = vmin.f32 %v574, %v654
        %v673 = vmin.f32 %v575, %v657
        %v674 = vmin.f32 %v576, %v662
        %v675 = vmin.f32 %v577, %v665
        %v676 = vadd.f32 %v654, %v657
        %v677 = vadd.f32 %v676, %v662
        %v678 = vadd.f32 %v677, %v665
        %v679 = vrot.slane %v678, 4
        %v680 = vadd.f32 %v678, %v679
        %v681 = vrot.slane %v680, 2
        %v682 = vadd.f32 %v680, %v681
        %v683 = vrot.slane %v682, 1
        %v684 = vadd.f32 %v682, %v683
        %v685 = vadd.f32 %v587, %v684
        %v686 = vmul.f32 %v654, %v654
        %v687 = vmul.f32 %v657, %v657
        %v688 = vmul.f32 %v662, %v662
        %v689 = vmul.f32 %v665, %v665
        %v690 = vadd.f32 %v686, %v687
        %v691 = vadd.f32 %v690, %v688
        %v692 = vadd.f32 %v691, %v689
        %v693 = vrot.slane %v692, 4
        %v694 = vadd.f32 %v692, %v693
        %v695 = vrot.slane %v694, 2
        %v696 = vadd.f32 %v694, %v695
        %v697 = vrot.slane %v696, 1
        %v698 = vadd.f32 %v696, %v697
        %v699 = vadd.f32 %v601, %v698
        %s700 = scalar_lea.vmem %s291, 48 [#allocation2]
        %v701 = vld [vmem:[%s700] sm:$0xf]
        %v702 = vld [vmem:[%s700 + $0x4] sm:$0xf]
        %v703 = vld [vmem:[%s700 + $0x8] sm:$0xf]
        %v704 = vld [vmem:[%s700 + $0xc] sm:$0xf]
        %v709 = vunpack.c.l.b16 %v701
        %v710 = vunpack.c.l.b16 %v702
        %v711 = vunpack.c.l.b16 %v703
        %v712 = vunpack.c.l.b16 %v704
        %v713 = vpack.c.b16 %v710, %v709
        %v714 = vpack.c.b16 %v712, %v711
        %717 = vmatprep.subr.bf16.mxu0 0
        %718 = vmatpush1.bf16.msra.mxu0 %v424
        %719 = vmatprep.subr.bf16.mxu0 0
        %720 = vmatpush1.bf16.msra.mxu0 %v423
        %721 = vmatprep.subr.bf16.mxu0 0
        %722 = vmatpush1.bf16.msra.mxu0 %v422
        %723 = vmatprep.subr.bf16.mxu0 0
        %724 = vmatpush1.bf16.msra.mxu0 %v421
        %725 = vmatprep.subr.bf16.mxu0 0
        %726 = vmatpush1.bf16.msra.mxu0 %v420
        %727 = vmatprep.subr.bf16.mxu0 0
        %728 = vmatpush1.bf16.msra.mxu0 %v419
        %729 = vmatprep.subr.bf16.mxu0 0
        %730 = vmatpush1.bf16.msra.mxu0 %v418
        %731 = vmatprep.subr.bf16.mxu0 0
        %732 = vmatpush1.bf16.msra.mxu0 %v417
        %733 = vmatprep.subr.bf16.mxu0 0
        %734 = vmatpush2.bf16.msra.mxu0 0
        %735 = vmatprep.subr.bf16.mxu0 0
        %736 = vmatpush2.bf16.msra.mxu0 0
        %737 = vmatprep.subr.bf16.mxu0 0
        %738 = vmatpush2.bf16.msra.mxu0 0
        %739 = vmatprep.subr.bf16.mxu0 0
        %740 = vmatpush2.bf16.msra.mxu0 0
        %741 = vmatprep.subr.bf16.mxu0 0
        %742 = vmatpush2.bf16.msra.mxu0 0
        %743 = vmatprep.subr.bf16.mxu0 0
        %744 = vmatpush2.bf16.msra.mxu0 0
        %745 = vmatprep.subr.bf16.mxu0 0
        %746 = vmatpush2.bf16.msra.mxu0 0
        %747 = vmatprep.subr.bf16.mxu0 0
        %748 = vmatpush2.bf16.msra.mxu0 0
        %749 = vmatprep.mubr.bf16.mxu0 0
        %750 = vmatmul.mubr.bf16.gmra.mxu0 %v713
        %v751 = vpop.f32.mrf.mxu0
        %v752 = vadd.f32 0.0, %v751
        %v753 = vpop.f32.mrf.mxu0
        %v754 = vpop.f32.mrf.mxu0
        %v755 = vadd.f32 0.0, %v754
        %v756 = vpop.f32.mrf.mxu0
        %757 = vmatprep.mubr.bf16.mxu0 0
        %758 = vmatmul.mubr.bf16.gmra.mxu0 %v714
        %v759 = vpop.f32.mrf.mxu0
        %v760 = vadd.f32 0.0, %v759
        %v761 = vpop.f32.mrf.mxu0
        %v762 = vpop.f32.mrf.mxu0
        %v763 = vadd.f32 0.0, %v762
        %v764 = vpop.f32.mrf.mxu0
        %765 = vdwg.mxu0
        %v766 = vmax.f32 %v668, %v752
        %v767 = vmax.f32 %v669, %v755
        %v768 = vmax.f32 %v670, %v760
        %v769 = vmax.f32 %v671, %v763
        %v770 = vmin.f32 %v672, %v752
        %v771 = vmin.f32 %v673, %v755
        %v772 = vmin.f32 %v674, %v760
        %v773 = vmin.f32 %v675, %v763
        %v774 = vadd.f32 %v752, %v755
        %v775 = vadd.f32 %v774, %v760
        %v776 = vadd.f32 %v775, %v763
        %v777 = vrot.slane %v776, 4
        %v778 = vadd.f32 %v776, %v777
        %v779 = vrot.slane %v778, 2
        %v780 = vadd.f32 %v778, %v779
        %v781 = vrot.slane %v780, 1
        %v782 = vadd.f32 %v780, %v781
        %v783 = vadd.f32 %v685, %v782
        %v784 = vmul.f32 %v752, %v752
        %v785 = vmul.f32 %v755, %v755
        %v786 = vmul.f32 %v760, %v760
        %v787 = vmul.f32 %v763, %v763
        %v788 = vadd.f32 %v784, %v785
        %v789 = vadd.f32 %v788, %v786
        %v790 = vadd.f32 %v789, %v787
        %v791 = vrot.slane %v790, 4
        %v792 = vadd.f32 %v790, %v791
        %v793 = vrot.slane %v792, 2
        %v794 = vadd.f32 %v792, %v793
        %v795 = vrot.slane %v794, 1
        %v796 = vadd.f32 %v794, %v795
        %v797 = vadd.f32 %v699, %v796
        %798 = vst [vmem:[%s315] sm:$0xff] %v766
        %799 = vst [vmem:[%s315 + $0x8] sm:$0xff] %v767
        %800 = vst [vmem:[%s315 + $0x10] sm:$0xff] %v768
        %801 = vst [vmem:[%s315 + $0x18] sm:$0xff] %v769
        %802 = vst [vmem:[%s322] sm:$0xff] %v770
        %803 = vst [vmem:[%s322 + $0x8] sm:$0xff] %v771
        %804 = vst [vmem:[%s322 + $0x10] sm:$0xff] %v772
        %805 = vst [vmem:[%s322 + $0x18] sm:$0xff] %v773
        %v806 = vld [vmem:[%s329] sm:$0xff]
        %v807 = vadd.f32 %v806, %v783
        %808 = vst [vmem:[%s329] sm:$0xff] %v807
        %v809 = vld [vmem:[%s336] sm:$0xff]
        %v810 = vadd.f32 %v809, %v797
        %811 = vst [vmem:[%s336] sm:$0xff] %v810
        %s812 = sand.u32 %s105, 1
        %s813 = scalar_lea.sflag [#allocation4], %s812
        %s814 = sand.u32 %s105, 1
        %s815 = smul.addr %s814, 32
        %s816 = scalar_lea.vmem [#allocation7], %s815
        %s817 = sand.u32 %s30, 1
        %s818 = scalar_lea.sflag [#allocation9], %s817
        %s819 = sand.u32 %s135, 1
        %s820 = smul.addr %s819, 32
        %s821 = scalar_lea.vmem [#allocation8], %s820
        %s822 = sand.u32 %s30, 1
        %s823 = scalar_lea.sflag [#allocation9], %s822
        %s824 = sand.u32 %s161, 1
        %s825 = smul.addr %s824, 8
        %s826 = scalar_lea.vmem [#allocation10], %s825
        %s827 = sand.u32 %s187, 1
        %s828 = scalar_lea.sflag [#allocation12], %s827
        %s829 = sand.u32 %s187, 1
        %s830 = smul.addr %s829, 8
        %s831 = scalar_lea.vmem [#allocation11], %s830
        // Predicated region
        $region41: #{tpu_custom_call.1} parent=27 // pred_check
          %p832 = pneg %p115
        $region42: #{tpu_custom_call.1} parent=27 // pred_check_branch
          %834 = sbr.rel (%p832) target = $region44
        $region43: #{tpu_custom_call.1} parent=27 // pred_region
          %s835 = smul.u32 %s34, 2
          %s836 = sadd.s32 %s835, %s35
          %s837 = smul.u32 4, %s836
          %s839 = ssub.s32 512, 512
          %840 = vsyncadd %s813, %s839
          %s841 = smul.addr %s837, 128
          %s842 = scalar_lea.hbm %s2, %s841
          %s843 = sshll.u32 %s816, 4
          %s844 = int_to_ptr.vmem [resolvable:$true] %s843
          %849 = dma.vmem_to_hbm [thread:$0]  %s844, 512, %s842, %s813, 128, 128, 8
        $region44: #{tpu_custom_call.1} parent=27 // pred_fallthru
          _
        // Predicated region
        $region45: #{tpu_custom_call.1} parent=27 // pred_check
          %p850 = pneg %p145
        $region46: #{tpu_custom_call.1} parent=27 // pred_check_branch
          %852 = sbr.rel (%p850) target = $region48
        $region47: #{tpu_custom_call.1} parent=27 // pred_region
          %s853 = smul.u32 %s34, 2
          %s854 = sadd.s32 %s853, %s35
          %s855 = smul.u32 4, %s854
          %s857 = ssub.s32 512, 512
          %858 = vsyncadd %s818, %s857
          %s859 = smul.addr %s855, 128
          %s860 = scalar_lea.hbm %s3, %s859
          %s861 = sshll.u32 %s821, 4
          %s862 = int_to_ptr.vmem [resolvable:$true] %s861
          %867 = dma.vmem_to_hbm [thread:$0]  %s862, 512, %s860, %s818, 128, 128, 8
        $region48: #{tpu_custom_call.1} parent=27 // pred_fallthru
          _
        // Predicated region
        $region49: #{tpu_custom_call.1} parent=27 // pred_check
          %p868 = pneg %p171
        $region50: #{tpu_custom_call.1} parent=27 // pred_check_branch
          %870 = sbr.rel (%p868) target = $region52
        $region51: #{tpu_custom_call.1} parent=27 // pred_region
          %s872 = ssub.s32 128, 128
          %873 = vsyncadd %s823, %s872
          %s874 = smul.addr %s34, 128
          %s875 = scalar_lea.hbm %s4, %s874
          %s877 = sshll.u32 %s826, 4
          %s878 = int_to_ptr.vmem [resolvable:$true] %s877
          %880 = dma.vmem_to_hbm [thread:$0]  %s878, 128, %s875, %s823
        $region52: #{tpu_custom_call.1} parent=27 // pred_fallthru
          _
        // Predicated region
        $region53: #{tpu_custom_call.1} parent=27 // pred_check
          %p881 = pneg %p197
        $region54: #{tpu_custom_call.1} parent=27 // pred_check_branch
          %883 = sbr.rel (%p881) target = $region56
        $region55: #{tpu_custom_call.1} parent=27 // pred_region
          %s885 = ssub.s32 128, 128
          %886 = vsyncadd %s828, %s885
          %s887 = smul.addr %s34, 128
          %s888 = scalar_lea.hbm %s5, %s887
          %s890 = sshll.u32 %s831, 4
          %s891 = int_to_ptr.vmem [resolvable:$true] %s890
          %893 = dma.vmem_to_hbm [thread:$0]  %s891, 128, %s888, %s828
        $region56: #{tpu_custom_call.1} parent=27 // pred_fallthru
          _
      $region28: #{tpu_custom_call.1} parent=5 // pred_fallthru
        _
      %p894 = scmp.le.s32.totalorder 2, %s25
      // Predicated region
      $region57: #{tpu_custom_call.1} parent=5 // pred_check
        %p895 = pneg %p894
      $region58: #{tpu_custom_call.1} parent=5 // pred_check_branch
        %897 = sbr.rel (%p895) target = $region60
      $region59: #{tpu_custom_call.1} parent=5 // pred_region
        %s898 = ssub.s32 %s25, 2
        // Predicated region
        $region61: #{tpu_custom_call.1} parent=59 // pred_check
          %p899 = pneg %p121
        $region62: #{tpu_custom_call.1} parent=59 // pred_check_branch
          %901 = sbr.rel (%p899) target = $region64
        $region63: #{tpu_custom_call.1} parent=59 // pred_region
          %s902 = sand.u32 %s106, 1
          %s903 = scalar_lea.sflag [#allocation4], %s902
          %s904 = sand.u32 %s106, 1
          %s905 = smul.addr %s904, 32
          %s906 = scalar_lea.vmem [#allocation7], %s905
          %907 = dma.done %s903, 512
        $region64: #{tpu_custom_call.1} parent=59 // pred_fallthru
          _
        // Predicated region
        $region65: #{tpu_custom_call.1} parent=59 // pred_check
          %p908 = pneg %p151
        $region66: #{tpu_custom_call.1} parent=59 // pred_check_branch
          %910 = sbr.rel (%p908) target = $region68
        $region67: #{tpu_custom_call.1} parent=59 // pred_region
          %s911 = sand.u32 %s31, 1
          %s912 = scalar_lea.sflag [#allocation9], %s911
          %s913 = sand.u32 %s136, 1
          %s914 = smul.addr %s913, 32
          %s915 = scalar_lea.vmem [#allocation8], %s914
          %916 = dma.done %s912, 512
        $region68: #{tpu_custom_call.1} parent=59 // pred_fallthru
          _
        // Predicated region
        $region69: #{tpu_custom_call.1} parent=59 // pred_check
          %p917 = pneg %p177
        $region70: #{tpu_custom_call.1} parent=59 // pred_check_branch
          %919 = sbr.rel (%p917) target = $region72
        $region71: #{tpu_custom_call.1} parent=59 // pred_region
          %s920 = sand.u32 %s31, 1
          %s921 = scalar_lea.sflag [#allocation9], %s920
          %s922 = sand.u32 %s162, 1
          %s923 = smul.addr %s922, 8
          %s924 = scalar_lea.vmem [#allocation10], %s923
          %925 = dma.done %s921, 128
        $region72: #{tpu_custom_call.1} parent=59 // pred_fallthru
          _
        // Predicated region
        $region73: #{tpu_custom_call.1} parent=59 // pred_check
          %p926 = pneg %p203
        $region74: #{tpu_custom_call.1} parent=59 // pred_check_branch
          %928 = sbr.rel (%p926) target = $region76
        $region75: #{tpu_custom_call.1} parent=59 // pred_region
          %s929 = sand.u32 %s188, 1
          %s930 = scalar_lea.sflag [#allocation12], %s929
          %s931 = sand.u32 %s188, 1
          %s932 = smul.addr %s931, 8
          %s933 = scalar_lea.vmem [#allocation11], %s932
          %934 = dma.done %s930, 128
        $region76: #{tpu_custom_call.1} parent=59 // pred_fallthru
          _
      $region60: #{tpu_custom_call.1} parent=5 // pred_fallthru
        _
    $region6: #{tpu_custom_call.1} parent=1 // loop_footer
      %s29 = sadd.s32 1, %s25
    $region7: #{tpu_custom_call.1} parent=1 // loop_footer_branch
      %24 = sbr.rel target = $region3
    $region8: #{tpu_custom_call.1} parent=1 // loop_exit
      _
    %935 = vsyncpa [#allocation3], 1
    %s936 = scalar_lea.sflag [#allocation3], 1
    %937 = vsyncpa %s936, 1
    %938 = vsyncpa [#allocation6], 1
    %939 = vsyncpa [#allocation4], 1
    %s940 = scalar_lea.sflag [#allocation4], 1
    %941 = vsyncpa %s940, 1
    %942 = vsyncpa [#allocation9], 1
    %s943 = scalar_lea.sflag [#allocation9], 1
    %944 = vsyncpa %s943, 1
    %945 = vsyncpa [#allocation12], 1
    %s946 = scalar_lea.sflag [#allocation12], 1
    %947 = vsyncpa %s946, 1

</llo_original>
